<compile_context>
chip_gen: v6e
topology: v6e:2x2x1
jax: 0.10.0
libtpu: 0.0.40
codegen_flags: <defaults>
</compile_context>

<pallas_src>
import math
import jax
import jax.numpy as jnp
from jax.experimental import pallas as pl
from jax.experimental.pallas import tpu as pltpu

_BN_EPS = 1e-5


# ---------------------------------------------------------------------------
# Fused kernel: Linear1 -> ReLU -> BatchNorm1d (train-mode) -> Linear2 -> ReLU
# ---------------------------------------------------------------------------
def _fc_fused_kernel(x_ref, w1_ref, vecs_ref, w2_ref, o_ref):
    f_out = o_ref.shape[-1]

    # Packed per-feature vectors: rows = [b1, gamma, beta, b2 (padded to hidden)]
    b1 = vecs_ref[0:1, :]
    gamma = vecs_ref[1:2, :]
    beta = vecs_ref[2:3, :]
    b2 = vecs_ref[3:4, :][:, :f_out]                    # static lane slice, first f_out cols

    # ---- layer 1: Linear(in -> hidden) + ReLU (MXU + VPU) ----
    x = x_ref[...]
    h = jnp.dot(x, w1_ref[...], preferred_element_type=jnp.float32)
    h = jnp.maximum(h + b1, 0.0)                        # (B, H) + (1, H)

    # ---- BatchNorm1d(hidden), training-mode batch statistics ----
    # Two independent sublane reductions (overlap on XLU), then E[h^2]-mean^2.
    inv_b = 1.0 / x.shape[0]
    s = jnp.sum(h, axis=0, keepdims=True)
    sq = jnp.sum(h * h, axis=0, keepdims=True)
    mean = s * inv_b
    var = jnp.maximum(sq * inv_b - mean * mean, 0.0)    # clamp: guard cancellation -> NaN
    scale = gamma * jax.lax.rsqrt(var + _BN_EPS)        # rsqrt -> EUP slot
    shift = beta - mean * scale
    h = h * scale + shift                               # 1 mul + 1 add per element

    # ---- layer 2: Linear(hidden -> out) + ReLU ----
    y = jnp.dot(h, w2_ref[...], preferred_element_type=jnp.float32)
    o_ref[...] = jnp.maximum(y + b2, 0.0)               # direct (B, f_out) store


# ---------------------------------------------------------------------------
# One-time parameter packing (hoisted out of the forward path)
# ---------------------------------------------------------------------------
def pack_fc_params(params):
    """Convert natural-layout params to kernel-ready operands. Call ONCE, reuse.

    NOTE: this bakes training-mode BN (per-batch stats). For PyTorch eval()
    semantics, fold running_mean/var into gamma/beta before packing instead.
    """
    p1, p2 = params
    hidden = p1["w"].shape[1]
    f_out = p2["w"].shape[1]

    vecs = jnp.zeros((4, hidden), jnp.float32)
    vecs = vecs.at[0, :].set(p1["b"])
    vecs = vecs.at[1, :].set(p1["gamma"])
    vecs = vecs.at[2, :].set(p1["beta"])
    vecs = vecs.at[3, :f_out].set(p2["b"])              # b2 lives in the first f_out lanes

    return {"w1": p1["w"], "vecs": vecs, "w2": p2["w"]}


# ---------------------------------------------------------------------------
# Forward wrapper: exactly one fused pallas_call, nothing else
# ---------------------------------------------------------------------------
@jax.jit
def fc_forward(x, packed):
    """x: (B, in_features) float32. packed: output of pack_fc_params."""
    w1, vecs, w2 = packed["w1"], packed["vecs"], packed["w2"]
    B, f_in = x.shape
    hidden = w1.shape[1]
    f_out = w2.shape[1]

    flops = 2 * B * (f_in * hidden + hidden * f_out)
    bytes_accessed = 4 * (x.size + w1.size + vecs.size + w2.size + B * f_out)
    cost = pl.CostEstimate(
        flops=int(flops),
        transcendentals=int(hidden),                    # one rsqrt per hidden feature
        bytes_accessed=int(bytes_accessed),
    )

    vmem_spec = pl.BlockSpec(memory_space=pltpu.MemorySpace.VMEM)  # full-array VMEM blocks

    return pl.pallas_call(
        _fc_fused_kernel,
        out_shape=jax.ShapeDtypeStruct((B, f_out), jnp.float32),
        in_specs=[vmem_spec, vmem_spec, vmem_spec, vmem_spec],
        out_specs=vmem_spec,
        cost_estimate=cost,
    )(x, w1, vecs, w2)


# ---------------------------------------------------------------------------
# Deterministic parameter construction (shapes follow FC.__init__ for this config)
# ---------------------------------------------------------------------------
def init_fc_params(key, in_features=32, out_features=8):
    hidden = 128  # _pick_n_neurons(32) -> 128 (>= out_features)
    k1, k2, k3, k4 = jax.random.split(key, 4)

    def linear_init(kw, kb, fin, fout):
        bound = 1.0 / math.sqrt(fin)
        w = jax.random.uniform(kw, (fin, fout), jnp.float32, -bound, bound)
        b = jax.random.uniform(kb, (fout,), jnp.float32, -bound, bound)
        return w, b

    w1, b1 = linear_init(k1, k2, in_features, hidden)
    w2, b2 = linear_init(k3, k4, hidden, out_features)

    return [
        {  # Linear(32,128) -> ReLU -> BatchNorm1d(128)
            "w": w1, "b": b1,
            "gamma": jnp.ones((hidden,), jnp.float32),
            "beta": jnp.zeros((hidden,), jnp.float32),
        },
        {  # Linear(128,8) -> ReLU   (no batchnorm on final layer)
            "w": w2, "b": b2,
        },
    ]


# ---------------------------------------------------------------------------
if __name__ == "__main__":
    key = jax.random.PRNGKey(0)
    kx, kp = jax.random.split(key)

    batch = 8
    in_features = 32
    out_features = 8

    x = jax.random.normal(kx, (batch, in_features), jnp.float32)
    params = init_fc_params(kp, in_features, out_features)
    packed = pack_fc_params(params)          # one-time packing, outside the forward path

    out = fc_forward(x, packed)
    out = jax.block_until_ready(out)

    assert out.shape == (batch, out_features)
    assert out.dtype == jnp.float32
    assert bool(jnp.all(jnp.isfinite(out)))
    print("KERNEL_OK")
</pallas_src>

<mosaic_0001>
module attributes {stable_mosaic.version = 11 : i64} {
  func.func @_fc_fused_kernel(%arg0: memref<8x32xf32, #tpu.memory_space<vmem>>, %arg1: memref<32x128xf32, #tpu.memory_space<vmem>>, %arg2: memref<4x128xf32, #tpu.memory_space<vmem>>, %arg3: memref<128x8xf32, #tpu.memory_space<vmem>>, %arg4: memref<8x8xf32, #tpu.memory_space<vmem>>) attributes {dimension_semantics = [], scalar_prefetch = 0 : i64, scratch_operands = 0 : i64, tpu.core_type = #tpu.core_type<tc>} {
    %c0 = arith.constant 0 : index
    %c0_0 = arith.constant 0 : index
    %0 = vector.load %arg2[%c0, %c0_0] : memref<4x128xf32, #tpu.memory_space<vmem>>, vector<1x128xf32>
    %c1 = arith.constant 1 : index
    %c0_1 = arith.constant 0 : index
    %1 = vector.load %arg2[%c1, %c0_1] : memref<4x128xf32, #tpu.memory_space<vmem>>, vector<1x128xf32>
    %c2 = arith.constant 2 : index
    %c0_2 = arith.constant 0 : index
    %2 = vector.load %arg2[%c2, %c0_2] : memref<4x128xf32, #tpu.memory_space<vmem>>, vector<1x128xf32>
    %c3 = arith.constant 3 : index
    %c0_3 = arith.constant 0 : index
    %3 = vector.load %arg2[%c3, %c0_3] : memref<4x128xf32, #tpu.memory_space<vmem>>, vector<1x128xf32>
    %4 = vector.extract_strided_slice %3 {offsets = [0, 0], sizes = [1, 8], strides = [1, 1]} : vector<1x128xf32> to vector<1x8xf32>
    %c0_4 = arith.constant 0 : index
    %c0_5 = arith.constant 0 : index
    %5 = vector.load %arg0[%c0_4, %c0_5] : memref<8x32xf32, #tpu.memory_space<vmem>>, vector<8x32xf32>
    %c0_6 = arith.constant 0 : index
    %c0_7 = arith.constant 0 : index
    %6 = vector.load %arg1[%c0_6, %c0_7] : memref<32x128xf32, #tpu.memory_space<vmem>>, vector<32x128xf32>
    %cst = arith.constant dense<0.000000e+00> : vector<8x128xf32>
    %7 = tpu.matmul %5, %6, %cst {dimension_numbers = #tpu.dot_dimension_numbers<[1], [0], [0], [1], [0, 0, 1, 1], [], []>} : vector<8x32xf32>, vector<32x128xf32>, vector<8x128xf32> -> vector<8x128xf32>
    %8 = vector.broadcast %0 : vector<1x128xf32> to vector<8x128xf32>
    %9 = arith.addf %7, %8 : vector<8x128xf32>
    %cst_8 = arith.constant 0.000000e+00 : f32
    %10 = vector.broadcast %cst_8 : f32 to vector<8x128xf32>
    %11 = arith.maximumf %9, %10 : vector<8x128xf32>
    %cst_9 = arith.constant dense<0.000000e+00> : vector<128xf32>
    %12 = vector.multi_reduction <add>, %11, %cst_9 [0] : vector<8x128xf32> to vector<128xf32>
    %13 = vector.shape_cast %12 : vector<128xf32> to vector<1x128xf32>
    %14 = arith.mulf %11, %11 : vector<8x128xf32>
    %cst_10 = arith.constant dense<0.000000e+00> : vector<128xf32>
    %15 = vector.multi_reduction <add>, %14, %cst_10 [0] : vector<8x128xf32> to vector<128xf32>
    %16 = vector.shape_cast %15 : vector<128xf32> to vector<1x128xf32>
    %cst_11 = arith.constant 1.250000e-01 : f32
    %17 = vector.broadcast %cst_11 : f32 to vector<1x128xf32>
    %18 = arith.mulf %13, %17 : vector<1x128xf32>
    %cst_12 = arith.constant 1.250000e-01 : f32
    %19 = vector.broadcast %cst_12 : f32 to vector<1x128xf32>
    %20 = arith.mulf %16, %19 : vector<1x128xf32>
    %21 = arith.mulf %18, %18 : vector<1x128xf32>
    %22 = arith.subf %20, %21 : vector<1x128xf32>
    %cst_13 = arith.constant 0.000000e+00 : f32
    %23 = vector.broadcast %cst_13 : f32 to vector<1x128xf32>
    %24 = arith.maximumf %22, %23 : vector<1x128xf32>
    %cst_14 = arith.constant 9.99999974E-6 : f32
    %25 = vector.broadcast %cst_14 : f32 to vector<1x128xf32>
    %26 = arith.addf %24, %25 : vector<1x128xf32>
    %27 = math.rsqrt %26 : vector<1x128xf32>
    %28 = arith.mulf %1, %27 : vector<1x128xf32>
    %29 = arith.mulf %18, %28 : vector<1x128xf32>
    %30 = arith.subf %2, %29 : vector<1x128xf32>
    %31 = vector.broadcast %28 : vector<1x128xf32> to vector<8x128xf32>
    %32 = arith.mulf %11, %31 : vector<8x128xf32>
    %33 = vector.broadcast %30 : vector<1x128xf32> to vector<8x128xf32>
    %34 = arith.addf %32, %33 : vector<8x128xf32>
    %c0_15 = arith.constant 0 : index
    %c0_16 = arith.constant 0 : index
    %35 = vector.load %arg3[%c0_15, %c0_16] : memref<128x8xf32, #tpu.memory_space<vmem>>, vector<128x8xf32>
    %cst_17 = arith.constant dense<0.000000e+00> : vector<8x8xf32>
    %36 = tpu.matmul %34, %35, %cst_17 {dimension_numbers = #tpu.dot_dimension_numbers<[1], [0], [0], [1], [0, 0, 1, 1], [], []>} : vector<8x128xf32>, vector<128x8xf32>, vector<8x8xf32> -> vector<8x8xf32>
    %37 = vector.broadcast %4 : vector<1x8xf32> to vector<8x8xf32>
    %38 = arith.addf %36, %37 : vector<8x8xf32>
    %cst_18 = arith.constant 0.000000e+00 : f32
    %39 = vector.broadcast %cst_18 : f32 to vector<8x8xf32>
    %40 = arith.maximumf %38, %39 : vector<8x8xf32>
    %c0_19 = arith.constant 0 : index
    %c0_20 = arith.constant 0 : index
    %41 = vector.load %arg4[%c0_19, %c0_20] : memref<8x8xf32, #tpu.memory_space<vmem>>, vector<8x8xf32>
    tpu.vector_store %arg4[%c0_19, %c0_20], %40 {strides = array<i32>} : memref<8x8xf32, #tpu.memory_space<vmem>>, vector<8x8xf32>,
    return
  }
}

</mosaic_0001>

<llo_original>
// kernel: fc_forward.1
$region0: #{fc_forward.1}
  #allocation0 [shape = 'u32[]', space=smem, size = 0x4, offset = 0x4, fixed_abs, tag = 'smem constant byte address 0x4 - core index']
  #allocation1 [shape = 'u32[144,128]{1,0:T(1,128)}', space=vmem, size = 0x12000, scoped, tag = 'internal scratch']
  %s0 = inlined_call_operand.vmem [shape: f32[8,32], index: 0, kind: input, shape index: {}]
  %s1 = inlined_call_operand.vmem [shape: f32[32,128], index: 1, kind: input, shape index: {}]
  %s2 = inlined_call_operand.vmem [shape: f32[4,128], index: 2, kind: input, shape index: {}]
  %s3 = inlined_call_operand.vmem [shape: f32[128,8], index: 3, kind: input, shape index: {}]
  %s4 = inlined_call_operand.hbm [shape: f32[8,8], index: 4, kind: output, shape index: {}]
  %s5 = sld [smem:[#allocation0]]
  $region26: #{fc_forward.1} parent=0
    _
  %s7 = ssub.s32 1, %s5
  %s8 = scalar_select 0, %s7, %s5
  $region1: #{fc_forward.1} parent=0
    #allocation2 [shape = 'u8[4096]{0}', space=vmem, size = 0x1000, scoped, tag = 'output window, operand 0, single buffered']
    #allocation3 [shape = 's32[1]{0}', space=sflag, size = 0x4, scoped, tag = 'scoped memory for fc_forward.1']
    %9 = vsyncpa [#allocation3], 0
    // Predicated region
    $region2: #{fc_forward.1} parent=1 // pred_check
      _
    $region3: #{fc_forward.1} parent=1 // pred_check_branch
      %11 = sbr.rel (0) target = $region5
    $region4: #{fc_forward.1} parent=1 // pred_region
      _
    $region5: #{fc_forward.1} parent=1 // pred_fallthru
      _
    // Predicated region
    $region6: #{fc_forward.1} parent=1 // pred_check
      _
    $region7: #{fc_forward.1} parent=1 // pred_check_branch
      %13 = sbr.rel (0) target = $region9
    $region8: #{fc_forward.1} parent=1 // pred_region
      _
    $region9: #{fc_forward.1} parent=1 // pred_fallthru
      _
    // Predicated region
    $region10: #{fc_forward.1} parent=1 // pred_check
      _
    $region11: #{fc_forward.1} parent=1 // pred_check_branch
      %15 = sbr.rel (0) target = $region13
    $region12: #{fc_forward.1} parent=1 // pred_region
      _
    $region13: #{fc_forward.1} parent=1 // pred_fallthru
      _
    // Predicated region
    $region14: #{fc_forward.1} parent=1 // pred_check
      _
    $region15: #{fc_forward.1} parent=1 // pred_check_branch
      %17 = sbr.rel (0) target = $region17
    $region16: #{fc_forward.1} parent=1 // pred_region
      _
    $region17: #{fc_forward.1} parent=1 // pred_fallthru
      _
    %v18 = vld [vmem:[%s2] sm:$0x1]
    %v19 = vld [vmem:[%s2 + $0x1] sm:$0x1]
    %v20 = vld [vmem:[%s2 + $0x2] sm:$0x1]
    %v21 = vld [vmem:[%s2 + $0x3] sm:$0x1]
    %v22 = vld [vmem:[%s0] sm:$0xff]
    %v23 = vld [vmem:[%s1] sm:$0xff]
    %v24 = vld [vmem:[%s1 + $0x8] sm:$0xff]
    %v25 = vld [vmem:[%s1 + $0x10] sm:$0xff]
    %v26 = vld [vmem:[%s1 + $0x18] sm:$0xff]
    %v27 = vlaneseq
    %v28 = vshrl.u32 %v27, 7
    %v29 = vsub.s32 0, %v28
    %v30 = vrot.slane %v18, %v29
    %vm31 = vcmask 261120
    %v33 = vsel %vm31, %v22, 0
    %35 = vmatprep.subr.mxu0 0.0
    %36 = vmatpush1.msra.mxu0 0.0
    %37 = vmatprep.subr.mxu0 0.0
    %38 = vmatpush1.msra.mxu0 0.0
    %39 = vmatprep.subr.mxu0 0.0
    %40 = vmatpush1.msra.mxu0 0.0
    %41 = vmatprep.subr.mxu0 0.0
    %42 = vmatpush1.msra.mxu0 0.0
    %43 = vmatprep.subr.mxu0 0.0
    %44 = vmatpush1.msra.mxu0 0.0
    %45 = vmatprep.subr.mxu0 0.0
    %46 = vmatpush1.msra.mxu0 0.0
    %47 = vmatprep.subr.mxu0 0.0
    %48 = vmatpush1.msra.mxu0 0.0
    %49 = vmatprep.subr.mxu0 0.0
    %50 = vmatpush1.msra.mxu0 0.0
    %51 = vmatprep.subr.mxu0 0.0
    %52 = vmatpush1.msra.mxu0 0.0
    %53 = vmatprep.subr.mxu0 0.0
    %54 = vmatpush1.msra.mxu0 0.0
    %55 = vmatprep.subr.mxu0 0.0
    %56 = vmatpush1.msra.mxu0 0.0
    %57 = vmatprep.subr.mxu0 0.0
    %58 = vmatpush1.msra.mxu0 0.0
    %59 = vmatprep.subr.mxu0 0.0
    %60 = vmatpush1.msra.mxu0 %v26
    %61 = vmatprep.subr.mxu0 0.0
    %62 = vmatpush1.msra.mxu0 %v25
    %63 = vmatprep.subr.mxu0 0.0
    %64 = vmatpush1.msra.mxu0 %v24
    %65 = vmatprep.subr.mxu0 0.0
    %66 = vmatpush1.msra.mxu0 %v23
    %67 = vmatprep.subr.mxu0 0.0
    %68 = vmatpush2.msra.mxu0 0.0
    %69 = vmatprep.subr.mxu0 0.0
    %70 = vmatpush2.msra.mxu0 0.0
    %71 = vmatprep.subr.mxu0 0.0
    %72 = vmatpush2.msra.mxu0 0.0
    %73 = vmatprep.subr.mxu0 0.0
    %74 = vmatpush2.msra.mxu0 0.0
    %75 = vmatprep.subr.mxu0 0.0
    %76 = vmatpush2.msra.mxu0 0.0
    %77 = vmatprep.subr.mxu0 0.0
    %78 = vmatpush2.msra.mxu0 0.0
    %79 = vmatprep.subr.mxu0 0.0
    %80 = vmatpush2.msra.mxu0 0.0
    %81 = vmatprep.subr.mxu0 0.0
    %82 = vmatpush2.msra.mxu0 0.0
    %83 = vmatprep.subr.mxu0 0.0
    %84 = vmatpush2.msra.mxu0 0.0
    %85 = vmatprep.subr.mxu0 0.0
    %86 = vmatpush2.msra.mxu0 0.0
    %87 = vmatprep.subr.mxu0 0.0
    %88 = vmatpush2.msra.mxu0 0.0
    %89 = vmatprep.subr.mxu0 0.0
    %90 = vmatpush2.msra.mxu0 0.0
    %91 = vmatprep.subr.mxu0 0.0
    %92 = vmatpush2.msra.mxu0 0.0
    %93 = vmatprep.subr.mxu0 0.0
    %94 = vmatpush2.msra.mxu0 0.0
    %95 = vmatprep.subr.mxu0 0.0
    %96 = vmatpush2.msra.mxu0 0.0
    %97 = vmatprep.subr.mxu0 0.0
    %98 = vmatpush2.msra.mxu0 0.0
    %99 = vmatprep.mubr.f32.mxu0 0.0
    %100 = vmatmul.mubr.f32.gmra.mxu0 %v33
    %v101 = vpop.f32.mrf.mxu0
    %v102 = vadd.f32 %v30, %v101
    %v103 = vpop.f32.mrf.mxu0
    %104 = vdwg.mxu0
    %v105 = vmax.f32 %v102, 0.0
    %v106 = vrot.slane %v105, 4
    %v107 = vadd.f32 %v105, %v106
    %v108 = vrot.slane %v107, 2
    %v109 = vadd.f32 %v107, %v108
    %v110 = vrot.slane %v109, 1
    %v111 = vadd.f32 %v109, %v110
    %v112 = vmul.f32 %v105, %v105
    %v113 = vrot.slane %v112, 4
    %v114 = vadd.f32 %v112, %v113
    %v115 = vrot.slane %v114, 2
    %v116 = vadd.f32 %v114, %v115
    %v117 = vrot.slane %v116, 1
    %v118 = vadd.f32 %v116, %v117
    %v119 = vmul.f32 %v111, 0.125
    %v120 = vmul.f32 %v118, 0.125
    %v121 = vmul.f32 %v119, %v119
    %v122 = vsub.f32 %v120, %v121
    %v123 = vmax.f32 %v122, 0.0
    %v124 = vadd.f32 %v123, 1e-05
    %v125 = vrsqrt.pop %v124
    %v126 = vmul.f32 %v19, %v125
    %v127 = vmul.f32 %v119, %v126
    %v128 = vsub.f32 %v20, %v127
    %v129 = vlaneseq
    %v130 = vshrl.u32 %v129, 7
    %v131 = vsub.s32 0, %v130
    %v132 = vrot.slane %v126, %v131
    %v133 = vmul.f32 %v105, %v132
    %v134 = vlaneseq
    %v135 = vshrl.u32 %v134, 7
    %v136 = vsub.s32 0, %v135
    %v137 = vrot.slane %v128, %v136
    %v138 = vadd.f32 %v133, %v137
    %v139 = vld [vmem:[%s3] sm:$0xff]
    %v140 = vld [vmem:[%s3 + $0x8] sm:$0xff]
    %v141 = vld [vmem:[%s3 + $0x10] sm:$0xff]
    %v142 = vld [vmem:[%s3 + $0x18] sm:$0xff]
    %v143 = vld [vmem:[%s3 + $0x20] sm:$0xff]
    %v144 = vld [vmem:[%s3 + $0x28] sm:$0xff]
    %v145 = vld [vmem:[%s3 + $0x30] sm:$0xff]
    %v146 = vld [vmem:[%s3 + $0x38] sm:$0xff]
    %v147 = vld [vmem:[%s3 + $0x40] sm:$0xff]
    %v148 = vld [vmem:[%s3 + $0x48] sm:$0xff]
    %v149 = vld [vmem:[%s3 + $0x50] sm:$0xff]
    %v150 = vld [vmem:[%s3 + $0x58] sm:$0xff]
    %v151 = vld [vmem:[%s3 + $0x60] sm:$0xff]
    %v152 = vld [vmem:[%s3 + $0x68] sm:$0xff]
    %v153 = vld [vmem:[%s3 + $0x70] sm:$0xff]
    %v154 = vld [vmem:[%s3 + $0x78] sm:$0xff]
    %v155 = vlaneseq
    %v156 = vshrl.u32 %v155, 7
    %v157 = vsub.s32 0, %v156
    %v158 = vrot.slane %v21, %v157
    %159 = vmatprep.subr.mxu0 0.0
    %160 = vmatpush1.msra.mxu0 %v154
    %161 = vmatprep.subr.mxu0 0.0
    %162 = vmatpush1.msra.mxu0 %v153
    %163 = vmatprep.subr.mxu0 0.0
    %164 = vmatpush1.msra.mxu0 %v152
    %165 = vmatprep.subr.mxu0 0.0
    %166 = vmatpush1.msra.mxu0 %v151
    %167 = vmatprep.subr.mxu0 0.0
    %168 = vmatpush1.msra.mxu0 %v150
    %169 = vmatprep.subr.mxu0 0.0
    %170 = vmatpush1.msra.mxu0 %v149
    %171 = vmatprep.subr.mxu0 0.0
    %172 = vmatpush1.msra.mxu0 %v148
    %173 = vmatprep.subr.mxu0 0.0
    %174 = vmatpush1.msra.mxu0 %v147
    %175 = vmatprep.subr.mxu0 0.0
    %176 = vmatpush1.msra.mxu0 %v146
    %177 = vmatprep.subr.mxu0 0.0
    %178 = vmatpush1.msra.mxu0 %v145
    %179 = vmatprep.subr.mxu0 0.0
    %180 = vmatpush1.msra.mxu0 %v144
    %181 = vmatprep.subr.mxu0 0.0
    %182 = vmatpush1.msra.mxu0 %v143
    %183 = vmatprep.subr.mxu0 0.0
    %184 = vmatpush1.msra.mxu0 %v142
    %185 = vmatprep.subr.mxu0 0.0
    %186 = vmatpush1.msra.mxu0 %v141
    %187 = vmatprep.subr.mxu0 0.0
    %188 = vmatpush1.msra.mxu0 %v140
    %189 = vmatprep.subr.mxu0 0.0
    %190 = vmatpush1.msra.mxu0 %v139
    %191 = vmatprep.subr.mxu0 0.0
    %192 = vmatpush2.msra.mxu0 0.0
    %193 = vmatprep.subr.mxu0 0.0
    %194 = vmatpush2.msra.mxu0 0.0
    %195 = vmatprep.subr.mxu0 0.0
    %196 = vmatpush2.msra.mxu0 0.0
    %197 = vmatprep.subr.mxu0 0.0
    %198 = vmatpush2.msra.mxu0 0.0
    %199 = vmatprep.subr.mxu0 0.0
    %200 = vmatpush2.msra.mxu0 0.0
    %201 = vmatprep.subr.mxu0 0.0
    %202 = vmatpush2.msra.mxu0 0.0
    %203 = vmatprep.subr.mxu0 0.0
    %204 = vmatpush2.msra.mxu0 0.0
    %205 = vmatprep.subr.mxu0 0.0
    %206 = vmatpush2.msra.mxu0 0.0
    %207 = vmatprep.subr.mxu0 0.0
    %208 = vmatpush2.msra.mxu0 0.0
    %209 = vmatprep.subr.mxu0 0.0
    %210 = vmatpush2.msra.mxu0 0.0
    %211 = vmatprep.subr.mxu0 0.0
    %212 = vmatpush2.msra.mxu0 0.0
    %213 = vmatprep.subr.mxu0 0.0
    %214 = vmatpush2.msra.mxu0 0.0
    %215 = vmatprep.subr.mxu0 0.0
    %216 = vmatpush2.msra.mxu0 0.0
    %217 = vmatprep.subr.mxu0 0.0
    %218 = vmatpush2.msra.mxu0 0.0
    %219 = vmatprep.subr.mxu0 0.0
    %220 = vmatpush2.msra.mxu0 0.0
    %221 = vmatprep.subr.mxu0 0.0
    %222 = vmatpush2.msra.mxu0 0.0
    %223 = vmatprep.mubr.f32.mxu0 0.0
    %224 = vmatmul.mubr.f32.gmra.mxu0 %v138
    %v225 = vpop.f32.mrf.mxu0
    %v226 = vadd.f32 %v158, %v225
    %v227 = vpop.f32.mrf.mxu0
    %228 = vdwg.mxu0
    %v229 = vmax.f32 %v226, 0.0
    %vm230 = vcmask 64512
    %231 = vst.msk [vmem:[#allocation2] sm:$0xff] %vm230, %v229
    // Predicated region
    $region18: #{fc_forward.1} parent=1 // pred_check
      _
    $region19: #{fc_forward.1} parent=1 // pred_check_branch
      %233 = sbr.rel (0) target = $region21
    $region20: #{fc_forward.1} parent=1 // pred_region
      %s235 = ssub.s32 128, 128
      %236 = vsyncadd [#allocation3], %s235
      %s238 = sshll.u32 [#allocation2], 4
      %s239 = int_to_ptr.vmem [resolvable:$true] %s238
      %241 = dma.vmem_to_hbm [thread:$0]  %s239, 128, %s4, [#allocation3]
    $region21: #{fc_forward.1} parent=1 // pred_fallthru
      _
    // Predicated region
    $region22: #{fc_forward.1} parent=1 // pred_check
      _
    $region23: #{fc_forward.1} parent=1 // pred_check_branch
      %243 = sbr.rel (0) target = $region25
    $region24: #{fc_forward.1} parent=1 // pred_region
      %244 = dma.done [#allocation3], 128
    $region25: #{fc_forward.1} parent=1 // pred_fallthru
      _
    %245 = vsyncpa [#allocation3], 1

</llo_original>
